<compile_context>
chip_gen: v5e
topology: v5e:2x2
jax: 0.10.0
libtpu: 0.0.40
codegen_flags: <defaults>
</compile_context>

<pallas_src>
import functools

import jax
import jax.numpy as jnp
from jax import lax
from jax.experimental import pallas as pl
from jax.experimental.pallas import tpu as pltpu

# --- small config consistent with the module structure ---
LOOKBACK = 64
FUTURE = 64                      # output / pred_len
D_TOKEN = LOOKBACK + FUTURE      # 128 (token feature dim, lane axis)
STRIDE = 16                      # external_stride
D_MODEL = 32                     # emb_size (d_model)
B = 2
C = 4                            # channels
L_IN = 192                       # input sequence length
EMB_INIT = 0.01


# ---------------------- Pallas kernel (warm-up branch, fused) ----------------------

def _ictsp_warmup_kernel(xt_ref, w_ref, b_ref, out_ref, *, lookback):
    """xt_ref: (B*C, D) raw target tokens; w_ref: (D, future) fused projection
    (w_in @ w_out); b_ref: (B*C, future) fused bias (b_in, channel mask, pos-emb and
    b_out folded in); out_ref: (B*C, future)."""
    xt = xt_ref[...]                                      # (B*C, D)
    # token_mean == x_tokens[:, :, [-(future + 1)]]  (value at index lookback - 1)
    token_mean = xt[:, lookback - 1:lookback]             # (B*C, 1)
    xc = xt - token_mean                                  # mean-centered tokens
    # single fused MXU pass: (B*C, D) x (D, future)
    # TODO(synk): cast operands to bf16 (keep f32 accumulation) if D/future ever scale up.
    out = jnp.dot(xc, w_ref[...], preferred_element_type=jnp.float32)
    out_ref[...] = (out + b_ref[...] + token_mean).astype(out_ref.dtype)


def ictsp_forward(x, params):
    B_, L, C_ = x.shape
    lookback, future = LOOKBACK, FUTURE
    n_targets = C_                                        # number_of_targets == 0 -> all channels

    # ---- host-side glue: build ONLY the target tokens (B, C, D); the tokenizer
    #      output is never read in the warm-up branch, so it is not built at all ----
    mean = x[:, -1, :]                                    # (B, C)   == x[:, [-1], :]
    hist = jnp.transpose(x[:, -lookback:, :], (0, 2, 1))  # (B, C, lookback)
    oe = params["output_embedding"][0, 0, :future]        # (future,)
    fut = oe[None, None, :] + mean[:, :, None]            # (B, C, future)
    x_target = jnp.concatenate([hist, fut], axis=-1)      # (B, C, D)
    xt_flat = x_target.reshape(B_ * C_, D_TOKEN)          # rows ordered (b, c)

    # ---- host-side algebraic fusion of the two linears + additive embeddings ----
    hi = lax.Precision.HIGHEST
    w_comb = jnp.dot(params["w_in"], params["w_out"], precision=hi)       # (D, future)
    # target tokens always get the last C rows of the channel mask and the LAST
    # in-context positional-embedding row (independent of the total token count N)
    emb_tgt = (params["channel_discerning_mask"][0, -C_:, :]
               + params["in_context_pos_emb"][0, -1, 0, :][None, :])      # (C, emb)
    b_comb = (jnp.dot(params["b_in"][None, :] + emb_tgt, params["w_out"], precision=hi)
              + params["b_out"][None, :])                                 # (C, future)
    b_tiled = jnp.tile(b_comb, (B_, 1))                                   # (B*C, future), rows (b, c)

    BC = B_ * C_
    kernel = functools.partial(_ictsp_warmup_kernel, lookback=lookback)
    out = pl.pallas_call(
        kernel,
        out_shape=jax.ShapeDtypeStruct((BC, future), jnp.float32),
        grid=(1,),                                        # single step: whole problem fits one MXU pass
        in_specs=[
            pl.BlockSpec((BC, D_TOKEN), lambda i: (0, 0)),      # target tokens (8, 128)
            pl.BlockSpec((D_TOKEN, future), lambda i: (0, 0)),  # fused projection (128, 64)
            pl.BlockSpec((BC, future), lambda i: (0, 0)),       # fused bias (8, 64)
        ],
        out_specs=pl.BlockSpec((BC, future), lambda i: (0, 0)),
    )(xt_flat, w_comb, b_tiled)

    out = out.reshape(B_, n_targets, future)              # (B, C, future)
    return jnp.transpose(out, (0, 2, 1))                  # (B, future, C) == permute(0, 2, 1)


# ------------------- pure-JAX reference of the ORIGINAL warm-up path -------------------
# (keeps the full tokenizer / all-token projection to validate the fused shortcut)

def _unfold_last(t, size, step):
    """torch.Tensor.unfold(dim=-1, size, step) equivalent."""
    L = t.shape[-1]
    nw = (L - size) // step + 1
    idx = jnp.arange(nw)[:, None] * step + jnp.arange(size)[None, :]
    return t[..., idx]                                    # (..., nw, size)


def tokenize(x_orig, lookback, future, stride):
    """Tokenizer.forward: flip(-1).unfold(2, d, s).flip(-1).flip(-2)."""
    d = lookback + future
    t = jnp.flip(x_orig, axis=-1)
    w = _unfold_last(t, d, stride)                        # (B, C, nw, d)
    w = jnp.flip(w, axis=-1)
    w = jnp.flip(w, axis=-2)
    return w


def _prepare_tokens(x, params):
    B_, L, C_ = x.shape
    future, lookback = FUTURE, LOOKBACK
    mean = x[:, -1:, :]                                          # (B, 1, C)
    xp = jnp.transpose(x, (0, 2, 1))                             # (B, C, L)
    oe = params["output_embedding"][:, :, :future]               # (1, 1, future)
    oe = jnp.broadcast_to(oe, (B_, C_, future)) + jnp.transpose(mean, (0, 2, 1))
    x_full = jnp.concatenate([xp, oe], axis=-1)                  # (B, C, L + future)

    n_targets = C_
    x_orig = x_full[:, :, :-future]                              # (B, C, L)
    x_target = x_full[:, -n_targets:, -(lookback + future):]     # (B, C, D)

    ex = tokenize(x_orig, lookback, future, STRIDE)              # (B, C, nw, D)
    nw = ex.shape[2]
    ex = jnp.transpose(ex, (0, 2, 1, 3)).reshape(B_, nw * C_, D_TOKEN)
    x_tokens = jnp.concatenate([ex, x_target], axis=1)           # (B, N, D)
    N = x_tokens.shape[1]

    reps = N // C_
    cmask = params["channel_discerning_mask"][0, -C_:, :]        # (C, emb)
    cmask_t = jnp.tile(cmask, (reps, 1))                         # (N, emb)
    pos = params["in_context_pos_emb"][0, -reps:, 0, :]          # (reps, emb)
    pos = jnp.broadcast_to(pos[:, None, :], (reps, C_, D_MODEL)).reshape(N, D_MODEL)
    emb_add = cmask_t + pos
    return x_tokens, emb_add, n_targets


def ictsp_reference(x, params):
    x_tokens, emb_add, n_targets = _prepare_tokens(x, params)
    token_mean = x_tokens[:, :, LOOKBACK - 1:LOOKBACK]
    xc = x_tokens - token_mean
    hi = lax.Precision.HIGHEST
    proj = jnp.matmul(xc, params["w_in"], precision=hi) + params["b_in"] + emb_add[None]
    tgt = proj[:, -n_targets:, :]
    out = (jnp.matmul(tgt, params["w_out"], precision=hi) + params["b_out"]
           + token_mean[:, -n_targets:, :])
    return jnp.transpose(out, (0, 2, 1))                         # (B, future, C)


if __name__ == "__main__":
    key = jax.random.PRNGKey(0)
    ks = jax.random.split(key, 7)
    x = jax.random.normal(ks[0], (B, L_IN, C), jnp.float32)

    # deterministic parameter init mirroring the module's __init__/_init_weights
    params = {
        "output_embedding": EMB_INIT * jax.random.normal(ks[1], (1, 1, 1200), jnp.float32),
        "channel_discerning_mask": EMB_INIT * jax.random.normal(ks[2], (1, 1024, D_MODEL), jnp.float32),
        "in_context_pos_emb": EMB_INIT * jax.random.normal(ks[3], (1, 8192, 1, D_MODEL), jnp.float32),
        # nn.Linear weights: normal(0, 0.02), zero bias; stored pre-transposed (in, out)
        "w_in": 0.02 * jax.random.normal(ks[4], (D_TOKEN, D_MODEL), jnp.float32),
        "b_in": jnp.zeros((D_MODEL,), jnp.float32),
        "w_out": 0.02 * jax.random.normal(ks[5], (D_MODEL, FUTURE), jnp.float32),
        "b_out": jnp.zeros((FUTURE,), jnp.float32),
    }

    out = jax.block_until_ready(ictsp_forward(x, params))
    ref = ictsp_reference(x, params)

    assert out.shape == (B, FUTURE, C), out.shape
    err = float(jnp.max(jnp.abs(out - ref)))
    assert jnp.allclose(out, ref, atol=1e-4, rtol=1e-4), err
    print("KERNEL_OK")
</pallas_src>

<mosaic_0001>
module attributes {stable_mosaic.version = 11 : i64} {
  func.func @_ictsp_warmup_kernel(%arg0: i32, %arg1: memref<8x128xf32, #tpu.memory_space<vmem>>, %arg2: memref<128x64xf32, #tpu.memory_space<vmem>>, %arg3: memref<8x64xf32, #tpu.memory_space<vmem>>, %arg4: memref<8x64xf32, #tpu.memory_space<vmem>>) attributes {dimension_semantics = [#tpu.dimension_semantics<arbitrary>], iteration_bounds = array<i64: 1>, scalar_prefetch = 0 : i64, scratch_operands = 0 : i64, tpu.core_type = #tpu.core_type<tc>, window_params = [{pipeline_mode = #tpu.pipeline_mode<synchronous>, transform_indices = @transform_0, window_bounds = array<i64: 8, 128>}, {pipeline_mode = #tpu.pipeline_mode<synchronous>, transform_indices = @transform_1, window_bounds = array<i64: 128, 64>}, {pipeline_mode = #tpu.pipeline_mode<synchronous>, transform_indices = @transform_2, window_bounds = array<i64: 8, 64>}, {pipeline_mode = #tpu.pipeline_mode<synchronous>, transform_indices = @transform_3, window_bounds = array<i64: 8, 64>}]} {
    %c0 = arith.constant 0 : index
    %c0_0 = arith.constant 0 : index
    %0 = vector.load %arg1[%c0, %c0_0] : memref<8x128xf32, #tpu.memory_space<vmem>>, vector<8x128xf32>
    %1 = vector.extract_strided_slice %0 {offsets = [0, 63], sizes = [8, 1], strides = [1, 1]} : vector<8x128xf32> to vector<8x1xf32>
    %2 = vector.broadcast %1 : vector<8x1xf32> to vector<8x128xf32>
    %3 = arith.subf %0, %2 : vector<8x128xf32>
    %c0_1 = arith.constant 0 : index
    %c0_2 = arith.constant 0 : index
    %4 = vector.load %arg2[%c0_1, %c0_2] : memref<128x64xf32, #tpu.memory_space<vmem>>, vector<128x64xf32>
    %cst = arith.constant dense<0.000000e+00> : vector<8x64xf32>
    %5 = tpu.matmul %3, %4, %cst {dimension_numbers = #tpu.dot_dimension_numbers<[1], [0], [0], [1], [0, 0, 1, 1], [], []>} : vector<8x128xf32>, vector<128x64xf32>, vector<8x64xf32> -> vector<8x64xf32>
    %c0_3 = arith.constant 0 : index
    %c0_4 = arith.constant 0 : index
    %6 = vector.load %arg3[%c0_3, %c0_4] : memref<8x64xf32, #tpu.memory_space<vmem>>, vector<8x64xf32>
    %7 = arith.addf %5, %6 : vector<8x64xf32>
    %8 = vector.broadcast %1 : vector<8x1xf32> to vector<8x64xf32>
    %9 = arith.addf %7, %8 : vector<8x64xf32>
    %c0_5 = arith.constant 0 : index
    %c0_6 = arith.constant 0 : index
    %10 = vector.load %arg4[%c0_5, %c0_6] : memref<8x64xf32, #tpu.memory_space<vmem>>, vector<8x64xf32>
    tpu.vector_store %arg4[%c0_5, %c0_6], %9 {strides = array<i32>} : memref<8x64xf32, #tpu.memory_space<vmem>>, vector<8x64xf32>,
    return
  }
  func.func @transform_0(%arg0: i32) -> (i32, i32) {
    %c0_i32 = arith.constant 0 : i32
    %c0_i32_0 = arith.constant 0 : i32
    %c0_i32_1 = arith.constant 0 : i32
    return %c0_i32, %c0_i32_0 : i32, i32
  }
  func.func @transform_1(%arg0: i32) -> (i32, i32) {
    %c0_i32 = arith.constant 0 : i32
    %c0_i32_0 = arith.constant 0 : i32
    %c0_i32_1 = arith.constant 0 : i32
    return %c0_i32, %c0_i32_0 : i32, i32
  }
  func.func @transform_2(%arg0: i32) -> (i32, i32) {
    %c0_i32 = arith.constant 0 : i32
    %c0_i32_0 = arith.constant 0 : i32
    %c0_i32_1 = arith.constant 0 : i32
    return %c0_i32, %c0_i32_0 : i32, i32
  }
  func.func @transform_3(%arg0: i32) -> (i32, i32) {
    %c0_i32 = arith.constant 0 : i32
    %c0_i32_0 = arith.constant 0 : i32
    %c0_i32_1 = arith.constant 0 : i32
    return %c0_i32, %c0_i32_0 : i32, i32
  }
}

</mosaic_0001>

<llo_original>
// kernel: tpu_custom_call.1
$region0: #{tpu_custom_call.1}
  #allocation0 [shape = 'u32[]', space=smem, size = 0x4, offset = 0x4, fixed_abs, tag = 'smem constant byte address 0x4 - core index']
  #allocation1 [shape = 'u32[72,128]{1,0:T(1,128)}', space=vmem, size = 0x9000, scoped, tag = 'internal scratch']
  %s0 = inlined_call_operand.vmem [shape: f32[8,128], index: 0, kind: input, shape index: {}]
  %s1 = inlined_call_operand.vmem [shape: f32[128,64], index: 1, kind: input, shape index: {}]
  %s2 = inlined_call_operand.vmem [shape: f32[8,64], index: 2, kind: input, shape index: {}]
  %s3 = inlined_call_operand.hbm [shape: f32[8,64], index: 3, kind: output, shape index: {}]
  %s4 = sld [smem:[#allocation0]]
  $region22: #{tpu_custom_call.1} parent=0
    _
  %s6 = ssub.s32 1, %s4
  %s7 = scalar_select 0, %s6, %s4
  $region1: #{tpu_custom_call.1} parent=0
    #allocation2 [shape = 'u8[4096]{0}', space=vmem, size = 0x1000, scoped, tag = 'output window, operand 0, single buffered']
    #allocation3 [shape = 's32[1]{0}', space=sflag, size = 0x4, scoped, tag = 'scoped memory for tpu_custom_call.1']
    %8 = vsyncpa [#allocation3], 0
    // Predicated region
    $region2: #{tpu_custom_call.1} parent=1 // pred_check
      _
    $region3: #{tpu_custom_call.1} parent=1 // pred_check_branch
      %10 = sbr.rel (0) target = $region5
    $region4: #{tpu_custom_call.1} parent=1 // pred_region
      _
    $region5: #{tpu_custom_call.1} parent=1 // pred_fallthru
      _
    // Predicated region
    $region6: #{tpu_custom_call.1} parent=1 // pred_check
      _
    $region7: #{tpu_custom_call.1} parent=1 // pred_check_branch
      %12 = sbr.rel (0) target = $region9
    $region8: #{tpu_custom_call.1} parent=1 // pred_region
      _
    $region9: #{tpu_custom_call.1} parent=1 // pred_fallthru
      _
    // Predicated region
    $region10: #{tpu_custom_call.1} parent=1 // pred_check
      _
    $region11: #{tpu_custom_call.1} parent=1 // pred_check_branch
      %14 = sbr.rel (0) target = $region13
    $region12: #{tpu_custom_call.1} parent=1 // pred_region
      _
    $region13: #{tpu_custom_call.1} parent=1 // pred_fallthru
      _
    %v15 = vld [vmem:[%s0] sm:$0xff]
    %17 = vset.pattern.permute.xlu0 63
    %18 = vperm.xlu0 %17, %v15
    %v19 = vpop.permute.xlu0 %18
    %v21 = vsub.f32 %v15, %v19
    %v22 = vld [vmem:[%s1] sm:$0xff]
    %v23 = vld [vmem:[%s1 + $0x8] sm:$0xff]
    %v24 = vld [vmem:[%s1 + $0x10] sm:$0xff]
    %v25 = vld [vmem:[%s1 + $0x18] sm:$0xff]
    %v26 = vld [vmem:[%s1 + $0x20] sm:$0xff]
    %v27 = vld [vmem:[%s1 + $0x28] sm:$0xff]
    %v28 = vld [vmem:[%s1 + $0x30] sm:$0xff]
    %v29 = vld [vmem:[%s1 + $0x38] sm:$0xff]
    %v30 = vld [vmem:[%s1 + $0x40] sm:$0xff]
    %v31 = vld [vmem:[%s1 + $0x48] sm:$0xff]
    %v32 = vld [vmem:[%s1 + $0x50] sm:$0xff]
    %v33 = vld [vmem:[%s1 + $0x58] sm:$0xff]
    %v34 = vld [vmem:[%s1 + $0x60] sm:$0xff]
    %v35 = vld [vmem:[%s1 + $0x68] sm:$0xff]
    %v36 = vld [vmem:[%s1 + $0x70] sm:$0xff]
    %v37 = vld [vmem:[%s1 + $0x78] sm:$0xff]
    %v38 = vld [vmem:[%s2] sm:$0xff]
    %39 = vmatpush.msra.mxu0 %v37
    %40 = vmatpush.msra.mxu0 %v36
    %41 = vmatpush.msra.mxu0 %v35
    %42 = vmatpush.msra.mxu0 %v34
    %43 = vmatpush.msra.mxu0 %v33
    %44 = vmatpush.msra.mxu0 %v32
    %45 = vmatpush.msra.mxu0 %v31
    %46 = vmatpush.msra.mxu0 %v30
    %47 = vmatpush.msra.mxu0 %v29
    %48 = vmatpush.msra.mxu0 %v28
    %49 = vmatpush.msra.mxu0 %v27
    %50 = vmatpush.msra.mxu0 %v26
    %51 = vmatpush.msra.mxu0 %v25
    %52 = vmatpush.msra.mxu0 %v24
    %53 = vmatpush.msra.mxu0 %v23
    %54 = vmatpush.msra.mxu0 %v22
    %55 = vmatmul.f32.gmra.mxu0 %v21
    %v56 = vpop.f32.mrf.mxu0
    %v57 = vadd.f32 %v38, %v56
    %58 = vdwg.mxu0
    %v59 = vadd.f32 %v57, %v19
    %vm60 = vcmask 523264
    %61 = vst.msk [vmem:[#allocation2] sm:$0xff] %vm60, %v59
    // Predicated region
    $region14: #{tpu_custom_call.1} parent=1 // pred_check
      _
    $region15: #{tpu_custom_call.1} parent=1 // pred_check_branch
      %63 = sbr.rel (0) target = $region17
    $region16: #{tpu_custom_call.1} parent=1 // pred_region
      %65 = vsyncadd [#allocation3], 0
      %s67 = sshll.u32 [#allocation2], 4
      %s68 = int_to_ptr.vmem [resolvable:$true] %s67
      %s69 = sshll.u32 %s3, 4
      %s70 = int_to_ptr.hbm [resolvable:$true] %s69
      %72 = dma.vmem_to_hbm [thread:$0]  %s68, 128, %s70, [#allocation3]
    $region17: #{tpu_custom_call.1} parent=1 // pred_fallthru
      _
    // Predicated region
    $region18: #{tpu_custom_call.1} parent=1 // pred_check
      _
    $region19: #{tpu_custom_call.1} parent=1 // pred_check_branch
      %74 = sbr.rel (0) target = $region21
    $region20: #{tpu_custom_call.1} parent=1 // pred_region
      %76 = dma.done [#allocation3], 128
    $region21: #{tpu_custom_call.1} parent=1 // pred_fallthru
      _
    %77 = vsyncpa [#allocation3], 1

</llo_original>
